<compile_context>
chip_gen: v7x
topology: tpu7x:2x2x1
jax: 0.10.0
libtpu: 0.0.40
codegen_flags: <defaults>
</compile_context>

<pallas_src>
import jax
import jax.numpy as jnp
from jax.experimental import pallas as pl
from jax.experimental.pallas import tpu as pltpu

H1 = 256          # fc1 out features
H2 = 128          # fc2 out features
_SUBLANE = 8      # f32 sublane granularity
_MAX_TB = 1024    # max batch-tile rows (per-step VMEM ~ a few MiB at most)
_SPLIT_B = 1024   # from this batch size on, force >= 2 grid steps (v7x: 2 TCs)


def _round_up(n, m):
    return ((n + m - 1) // m) * m


def dqn_kernel(x_ref, w1_ref, b1_ref, w2_ref, b2_ref, w3_ref, b3_ref, o_ref):
    """Fused relu(x@w1+b1) -> relu(.@w2+b2) -> .@w3+b3 on one batch tile."""
    wdt = w1_ref.dtype                       # f32 (default) or bf16 (opt-in)
    x = x_ref[...].astype(wdt)
    h1 = jnp.dot(x, w1_ref[...], preferred_element_type=jnp.float32) + b1_ref[...]
    h1 = jnp.maximum(h1, 0.0)
    h2 = jnp.dot(h1.astype(wdt), w2_ref[...],
                 preferred_element_type=jnp.float32) + b2_ref[...]
    h2 = jnp.maximum(h2, 0.0)
    q = jnp.dot(h2.astype(wdt), w3_ref[...],
                preferred_element_type=jnp.float32) + b3_ref[...]
    o_ref[...] = q
    # TODO(synk): for a pure action-selection consumer, fuse argmax over q here
    # and emit (tb, 1) int32 instead of the q-value slab (module spec returns
    # q-values, so we keep them).


def prepare_params(params, weight_dtype=jnp.float32):
    """One-time weight prep, hoisted out of the per-call path.

    Weights are stored (in_features, out_features) so the kernel computes
    y = x @ W + b (== PyTorch nn.Linear). Biases always stay float32 so the
    bias-add/ReLU epilogue is exact even on the bf16-weight path.
    """
    return (
        params["w1"].astype(weight_dtype),
        params["b1"].reshape(1, -1).astype(jnp.float32),
        params["w2"].astype(weight_dtype),
        params["b2"].reshape(1, -1).astype(jnp.float32),
        params["w3"].astype(weight_dtype),
        params["b3"].reshape(1, -1).astype(jnp.float32),
    )


def dqn_forward(x, prepared):
    """x: (B, input_dim) float32; prepared: output of prepare_params()."""
    w1, b1, w2, b2, w3, b3 = prepared
    x = x.astype(jnp.float32)
    B, input_dim = x.shape
    out_dim = w3.shape[1]

    # ---- batch tiling: balanced tiles, minimal padding ----------------------
    n_tiles = max(pl.cdiv(B, _MAX_TB), 2 if B >= _SPLIT_B else 1)
    if n_tiles == 1:
        # block == full array -> exempt from the (8,128) rule, zero padding.
        tb, b_pad = B, B
    else:
        tb = _round_up(pl.cdiv(B, n_tiles), _SUBLANE)
        b_pad = _round_up(B, tb)
    if b_pad != B:
        x = jnp.pad(x, ((0, b_pad - B), (0, 0)))      # rows only, never columns
    grid = (b_pad // tb,)

    # weights / biases: constant block index -> VMEM-resident across the grid
    resident = lambda shape: pl.BlockSpec(shape, lambda i: (0, 0))

    wbytes = jnp.dtype(w1.dtype).itemsize
    flops = 2 * b_pad * (input_dim * H1 + H1 * H2 + H2 * out_dim)
    bytes_accessed = (
        4 * (b_pad * input_dim + b_pad * out_dim + H1 + H2 + out_dim)
        + wbytes * (input_dim * H1 + H1 * H2 + H2 * out_dim))

    q = pl.pallas_call(
        dqn_kernel,
        out_shape=jax.ShapeDtypeStruct((b_pad, out_dim), jnp.float32),
        grid=grid,
        in_specs=[
            pl.BlockSpec((tb, input_dim), lambda i: (i, 0)),   # x: tiled over batch
            resident((input_dim, H1)),                         # w1
            resident((1, H1)),                                 # b1
            resident((H1, H2)),                                # w2
            resident((1, H2)),                                 # b2
            resident((H2, out_dim)),                           # w3
            resident((1, out_dim)),                            # b3
        ],
        out_specs=pl.BlockSpec((tb, out_dim), lambda i: (i, 0)),
        compiler_params=pltpu.CompilerParams(
            dimension_semantics=("parallel",),                 # megacore on v7x
        ),
        cost_estimate=pl.CostEstimate(
            flops=flops, transcendentals=0, bytes_accessed=bytes_accessed),
    )(x, w1, b1, w2, b2, w3, b3)

    return q if b_pad == B else q[:B]


def init_params(key, input_dim, output_dim):
    """Deterministic synthetic init (Kaiming-uniform-ish like PyTorch default)."""
    ks = jax.random.split(key, 6)

    def linear(kw, kb, fan_in, fan_out):
        bound = 1.0 / jnp.sqrt(jnp.float32(fan_in))
        w = jax.random.uniform(kw, (fan_in, fan_out), jnp.float32, -bound, bound)
        b = jax.random.uniform(kb, (1, fan_out), jnp.float32, -bound, bound)
        return w, b

    w1, b1 = linear(ks[0], ks[1], input_dim, H1)
    w2, b2 = linear(ks[2], ks[3], H1, H2)
    w3, b3 = linear(ks[4], ks[5], H2, output_dim)
    return {"w1": w1, "b1": b1, "w2": w2, "b2": b2, "w3": w3, "b3": b3}


def reference_forward(x, p):
    h1 = jnp.maximum(x @ p["w1"] + p["b1"], 0.0)
    h2 = jnp.maximum(h1 @ p["w2"] + p["b2"], 0.0)
    return h2 @ p["w3"] + p["b3"]


if __name__ == "__main__":
    key = jax.random.PRNGKey(0)
    k_x, k_p = jax.random.split(key)

    batch = 2        # online RL action-selection (tiny batch)
    input_dim = 16   # observation vector size
    output_dim = 5   # discrete action count

    x = jax.random.normal(k_x, (batch, input_dim), dtype=jnp.float32)
    params = init_params(k_p, input_dim, output_dim)
    prepared = prepare_params(params)            # one-time prep, out of call path

    q = dqn_forward(x, prepared)
    jax.block_until_ready(q)
    q_ref = reference_forward(x, params)
    assert q.shape == (batch, output_dim)
    assert jnp.allclose(q, q_ref, atol=1e-5, rtol=1e-5)

    # single-tile, non-multiple-of-8 batch (block == full array, zero padding)
    mid_B = 600
    xm = jax.random.normal(jax.random.PRNGKey(2), (mid_B, input_dim), dtype=jnp.float32)
    qm = dqn_forward(xm, prepared)
    jax.block_until_ready(qm)
    assert qm.shape == (mid_B, output_dim)
    assert jnp.allclose(qm, reference_forward(xm, params), atol=1e-4, rtol=1e-4)

    # multi-tile path (grid > 1, balanced tiles, minimal row padding)
    big_B = 2500
    xb = jax.random.normal(jax.random.PRNGKey(1), (big_B, input_dim), dtype=jnp.float32)
    qb = dqn_forward(xb, prepared)
    jax.block_until_ready(qb)
    assert qb.shape == (big_B, output_dim)
    assert jnp.allclose(qb, reference_forward(xb, params), atol=1e-4, rtol=1e-4)

    print("KERNEL_OK")
</pallas_src>

<mosaic_0001>
module attributes {stable_mosaic.version = 11 : i64} {
  func.func @dqn_kernel(%arg0: i32, %arg1: memref<2x16xf32, #tpu.memory_space<vmem>>, %arg2: memref<16x256xf32, #tpu.memory_space<vmem>>, %arg3: memref<1x256xf32, #tpu.memory_space<vmem>>, %arg4: memref<256x128xf32, #tpu.memory_space<vmem>>, %arg5: memref<1x128xf32, #tpu.memory_space<vmem>>, %arg6: memref<128x5xf32, #tpu.memory_space<vmem>>, %arg7: memref<1x5xf32, #tpu.memory_space<vmem>>, %arg8: memref<2x5xf32, #tpu.memory_space<vmem>>) attributes {dimension_semantics = [#tpu.dimension_semantics<parallel>], iteration_bounds = array<i64: 1>, scalar_prefetch = 0 : i64, scratch_operands = 0 : i64, tpu.core_type = #tpu.core_type<tc>, window_params = [{transform_indices = @transform_0, window_bounds = array<i64: 2, 16>}, {pipeline_mode = #tpu.pipeline_mode<synchronous>, transform_indices = @transform_1, window_bounds = array<i64: 16, 256>}, {pipeline_mode = #tpu.pipeline_mode<synchronous>, transform_indices = @transform_2, window_bounds = array<i64: 1, 256>}, {pipeline_mode = #tpu.pipeline_mode<synchronous>, transform_indices = @transform_3, window_bounds = array<i64: 256, 128>}, {pipeline_mode = #tpu.pipeline_mode<synchronous>, transform_indices = @transform_4, window_bounds = array<i64: 1, 128>}, {pipeline_mode = #tpu.pipeline_mode<synchronous>, transform_indices = @transform_5, window_bounds = array<i64: 128, 5>}, {pipeline_mode = #tpu.pipeline_mode<synchronous>, transform_indices = @transform_6, window_bounds = array<i64: 1, 5>}, {transform_indices = @transform_7, window_bounds = array<i64: 2, 5>}]} {
    %c0 = arith.constant 0 : index
    %c0_0 = arith.constant 0 : index
    %0 = vector.load %arg1[%c0, %c0_0] : memref<2x16xf32, #tpu.memory_space<vmem>>, vector<2x16xf32>
    %c0_1 = arith.constant 0 : index
    %c0_2 = arith.constant 0 : index
    %1 = vector.load %arg2[%c0_1, %c0_2] : memref<16x256xf32, #tpu.memory_space<vmem>>, vector<16x256xf32>
    %cst = arith.constant dense<0.000000e+00> : vector<2x256xf32>
    %2 = tpu.matmul %0, %1, %cst {dimension_numbers = #tpu.dot_dimension_numbers<[1], [0], [0], [1], [0, 0, 1, 1], [], []>} : vector<2x16xf32>, vector<16x256xf32>, vector<2x256xf32> -> vector<2x256xf32>
    %c0_3 = arith.constant 0 : index
    %c0_4 = arith.constant 0 : index
    %3 = vector.load %arg3[%c0_3, %c0_4] : memref<1x256xf32, #tpu.memory_space<vmem>>, vector<1x256xf32>
    %4 = vector.broadcast %3 : vector<1x256xf32> to vector<2x256xf32>
    %5 = arith.addf %2, %4 : vector<2x256xf32>
    %cst_5 = arith.constant 0.000000e+00 : f32
    %6 = vector.broadcast %cst_5 : f32 to vector<2x256xf32>
    %7 = arith.maximumf %5, %6 : vector<2x256xf32>
    %c0_6 = arith.constant 0 : index
    %c0_7 = arith.constant 0 : index
    %8 = vector.load %arg4[%c0_6, %c0_7] : memref<256x128xf32, #tpu.memory_space<vmem>>, vector<256x128xf32>
    %cst_8 = arith.constant dense<0.000000e+00> : vector<2x128xf32>
    %9 = tpu.matmul %7, %8, %cst_8 {dimension_numbers = #tpu.dot_dimension_numbers<[1], [0], [0], [1], [0, 0, 1, 1], [], []>} : vector<2x256xf32>, vector<256x128xf32>, vector<2x128xf32> -> vector<2x128xf32>
    %c0_9 = arith.constant 0 : index
    %c0_10 = arith.constant 0 : index
    %10 = vector.load %arg5[%c0_9, %c0_10] : memref<1x128xf32, #tpu.memory_space<vmem>>, vector<1x128xf32>
    %11 = vector.broadcast %10 : vector<1x128xf32> to vector<2x128xf32>
    %12 = arith.addf %9, %11 : vector<2x128xf32>
    %cst_11 = arith.constant 0.000000e+00 : f32
    %13 = vector.broadcast %cst_11 : f32 to vector<2x128xf32>
    %14 = arith.maximumf %12, %13 : vector<2x128xf32>
    %c0_12 = arith.constant 0 : index
    %c0_13 = arith.constant 0 : index
    %15 = vector.load %arg6[%c0_12, %c0_13] : memref<128x5xf32, #tpu.memory_space<vmem>>, vector<128x5xf32>
    %cst_14 = arith.constant dense<0.000000e+00> : vector<2x5xf32>
    %16 = tpu.matmul %14, %15, %cst_14 {dimension_numbers = #tpu.dot_dimension_numbers<[1], [0], [0], [1], [0, 0, 1, 1], [], []>} : vector<2x128xf32>, vector<128x5xf32>, vector<2x5xf32> -> vector<2x5xf32>
    %c0_15 = arith.constant 0 : index
    %c0_16 = arith.constant 0 : index
    %17 = vector.load %arg7[%c0_15, %c0_16] : memref<1x5xf32, #tpu.memory_space<vmem>>, vector<1x5xf32>
    %18 = vector.broadcast %17 : vector<1x5xf32> to vector<2x5xf32>
    %19 = arith.addf %16, %18 : vector<2x5xf32>
    %c0_17 = arith.constant 0 : index
    %c0_18 = arith.constant 0 : index
    %20 = vector.load %arg8[%c0_17, %c0_18] : memref<2x5xf32, #tpu.memory_space<vmem>>, vector<2x5xf32>
    tpu.vector_store %arg8[%c0_17, %c0_18], %19 {strides = array<i32>} : memref<2x5xf32, #tpu.memory_space<vmem>>, vector<2x5xf32>,
    return
  }
  func.func @transform_0(%arg0: i32) -> (i32, i32) {
    %c0_i32 = arith.constant 0 : i32
    %c0_i32_0 = arith.constant 0 : i32
    return %arg0, %c0_i32 : i32, i32
  }
  func.func @transform_1(%arg0: i32) -> (i32, i32) {
    %c0_i32 = arith.constant 0 : i32
    %c0_i32_0 = arith.constant 0 : i32
    %c0_i32_1 = arith.constant 0 : i32
    return %c0_i32, %c0_i32_0 : i32, i32
  }
  func.func @transform_2(%arg0: i32) -> (i32, i32) {
    %c0_i32 = arith.constant 0 : i32
    %c0_i32_0 = arith.constant 0 : i32
    %c0_i32_1 = arith.constant 0 : i32
    return %c0_i32, %c0_i32_0 : i32, i32
  }
  func.func @transform_3(%arg0: i32) -> (i32, i32) {
    %c0_i32 = arith.constant 0 : i32
    %c0_i32_0 = arith.constant 0 : i32
    %c0_i32_1 = arith.constant 0 : i32
    return %c0_i32, %c0_i32_0 : i32, i32
  }
  func.func @transform_4(%arg0: i32) -> (i32, i32) {
    %c0_i32 = arith.constant 0 : i32
    %c0_i32_0 = arith.constant 0 : i32
    %c0_i32_1 = arith.constant 0 : i32
    return %c0_i32, %c0_i32_0 : i32, i32
  }
  func.func @transform_5(%arg0: i32) -> (i32, i32) {
    %c0_i32 = arith.constant 0 : i32
    %c0_i32_0 = arith.constant 0 : i32
    %c0_i32_1 = arith.constant 0 : i32
    return %c0_i32, %c0_i32_0 : i32, i32
  }
  func.func @transform_6(%arg0: i32) -> (i32, i32) {
    %c0_i32 = arith.constant 0 : i32
    %c0_i32_0 = arith.constant 0 : i32
    %c0_i32_1 = arith.constant 0 : i32
    return %c0_i32, %c0_i32_0 : i32, i32
  }
  func.func @transform_7(%arg0: i32) -> (i32, i32) {
    %c0_i32 = arith.constant 0 : i32
    %c0_i32_0 = arith.constant 0 : i32
    return %arg0, %c0_i32 : i32, i32
  }
}

</mosaic_0001>

<llo_original>
// kernel: tpu_custom_call.1
$region0: #{tpu_custom_call.1}
  #allocation0 [shape = 'u32[]', space=smem, size = 0x4, offset = 0x4, fixed_abs, tag = 'smem constant byte address 0x4 - core index']
  #allocation1 [shape = 'u32[144,128]{1,0:T(1,128)}', space=vmem, size = 0x12000, scoped, tag = 'internal scratch']
  %s0 = inlined_call_operand.vmem [shape: f32[2,16], index: 0, kind: input, shape index: {}]
  %s1 = inlined_call_operand.vmem [shape: f32[16,256], index: 1, kind: input, shape index: {}]
  %s2 = inlined_call_operand.vmem [shape: f32[1,256], index: 2, kind: input, shape index: {}]
  %s3 = inlined_call_operand.hbm [shape: f32[256,128], index: 3, kind: input, shape index: {}]
  %s4 = inlined_call_operand.vmem [shape: f32[1,128], index: 4, kind: input, shape index: {}]
  %s5 = inlined_call_operand.vmem [shape: f32[128,5], index: 5, kind: input, shape index: {}]
  %s6 = inlined_call_operand.vmem [shape: f32[1,5], index: 6, kind: input, shape index: {}]
  %s7 = inlined_call_operand.hbm [shape: f32[2,5], index: 7, kind: output, shape index: {}]
  %s8 = sld [smem:[#allocation0]]
  $region42: #{tpu_custom_call.1} parent=0
    _
  %s10 = ssub.s32 1, %s8
  %s11 = scalar_select 0, %s10, %s8
  $region1: #{tpu_custom_call.1} parent=0
    #allocation2 [shape = 'u8[131072]{0}', space=vmem, size = 0x20000, scoped, tag = 'input window, operand 3, single buffered']
    #allocation3 [shape = 's32[1]{0}', space=sflag, size = 0x4, scoped, tag = 'scoped memory for tpu_custom_call.1']
    #allocation4 [shape = 's32[1]{0}', space=sflag, size = 0x4, scoped, tag = 'scoped memory for tpu_custom_call.1']
    #allocation5 [shape = 'u8[1024]{0}', space=vmem, size = 0x400, scoped, tag = 'output window, operand 0, single buffered']
    %12 = vsyncpa [#allocation3], 0
    %13 = vsyncpa [#allocation4], 0
    // Predicated region
    $region2: #{tpu_custom_call.1} parent=1 // pred_check
      _
    $region3: #{tpu_custom_call.1} parent=1 // pred_check_branch
      %15 = sbr.rel (0) target = $region5
    $region4: #{tpu_custom_call.1} parent=1 // pred_region
      _
    $region5: #{tpu_custom_call.1} parent=1 // pred_fallthru
      _
    // Predicated region
    $region6: #{tpu_custom_call.1} parent=1 // pred_check
      _
    $region7: #{tpu_custom_call.1} parent=1 // pred_check_branch
      %17 = sbr.rel (0) target = $region9
    $region8: #{tpu_custom_call.1} parent=1 // pred_region
      _
    $region9: #{tpu_custom_call.1} parent=1 // pred_fallthru
      _
    // Predicated region
    $region10: #{tpu_custom_call.1} parent=1 // pred_check
      _
    $region11: #{tpu_custom_call.1} parent=1 // pred_check_branch
      %19 = sbr.rel (0) target = $region13
    $region12: #{tpu_custom_call.1} parent=1 // pred_region
      _
    $region13: #{tpu_custom_call.1} parent=1 // pred_fallthru
      _
    // Predicated region
    $region14: #{tpu_custom_call.1} parent=1 // pred_check
      _
    $region15: #{tpu_custom_call.1} parent=1 // pred_check_branch
      %21 = sbr.rel (0) target = $region17
    $region16: #{tpu_custom_call.1} parent=1 // pred_region
      %s23 = ssub.s32 4096, 4096
      %24 = vsyncadd [#allocation3], %s23
      %s25 = sshll.u32 [#allocation2], 4
      %s26 = int_to_ptr.vmem [resolvable:$true] %s25
      %31 = dma.hbm_to_vmem [thread:$0]  %s3, 4096, %s26, [#allocation3], 128, 128, 8
    $region17: #{tpu_custom_call.1} parent=1 // pred_fallthru
      _
    // Predicated region
    $region18: #{tpu_custom_call.1} parent=1 // pred_check
      _
    $region19: #{tpu_custom_call.1} parent=1 // pred_check_branch
      %33 = sbr.rel (0) target = $region21
    $region20: #{tpu_custom_call.1} parent=1 // pred_region
      _
    $region21: #{tpu_custom_call.1} parent=1 // pred_fallthru
      _
    // Predicated region
    $region22: #{tpu_custom_call.1} parent=1 // pred_check
      _
    $region23: #{tpu_custom_call.1} parent=1 // pred_check_branch
      %35 = sbr.rel (0) target = $region25
    $region24: #{tpu_custom_call.1} parent=1 // pred_region
      _
    $region25: #{tpu_custom_call.1} parent=1 // pred_fallthru
      _
    // Predicated region
    $region26: #{tpu_custom_call.1} parent=1 // pred_check
      _
    $region27: #{tpu_custom_call.1} parent=1 // pred_check_branch
      %37 = sbr.rel (0) target = $region29
    $region28: #{tpu_custom_call.1} parent=1 // pred_region
      _
    $region29: #{tpu_custom_call.1} parent=1 // pred_fallthru
      _
    // Predicated region
    $region30: #{tpu_custom_call.1} parent=1 // pred_check
      _
    $region31: #{tpu_custom_call.1} parent=1 // pred_check_branch
      %39 = sbr.rel (0) target = $region33
    $region32: #{tpu_custom_call.1} parent=1 // pred_region
      %40 = dma.done [#allocation3], 4096
    $region33: #{tpu_custom_call.1} parent=1 // pred_fallthru
      _
    %v41 = vld [vmem:[%s0] sm:$0x3]
    %v42 = vld [vmem:[%s1] sm:$0xff]
    %v43 = vld [vmem:[%s1 + $0x8] sm:$0xff]
    %v44 = vld [vmem:[%s1 + $0x10] sm:$0xff]
    %v45 = vld [vmem:[%s1 + $0x18] sm:$0xff]
    %v46 = vld [vmem:[%s2] sm:$0x3]
    %v48 = vlaneseq
    %v49 = vshrl.u32 %v48, 7
    %v50 = vsub.s32 0, %v49
    %v51 = vrot.slane %v46, %v50
    %v52 = vlaneseq
    %v53 = vshrl.u32 %v52, 7
    %v54 = vsub.s32 1, %v53
    %v55 = vrot.slane %v46, %v54
    %vm58 = vcmask 130048
    %v60 = vsel %vm58, %v41, 0
    %62 = vmatprep.subr.mxu0 %v43
    %63 = vmatpush1.msra.mxu0 %v42
    %64 = vmatprep.subr.mxu0 %v45
    %65 = vmatpush1.msra.mxu0 %v44
    %66 = vmatprep.subr.mxu0 0.0
    %67 = vmatpush1.msra.mxu0 0.0
    %68 = vmatprep.subr.mxu0 0.0
    %69 = vmatpush1.msra.mxu0 0.0
    %70 = vmatprep.subr.mxu0 0.0
    %71 = vmatpush1.msra.mxu0 0.0
    %72 = vmatprep.subr.mxu0 0.0
    %73 = vmatpush1.msra.mxu0 0.0
    %74 = vmatprep.subr.mxu0 0.0
    %75 = vmatpush1.msra.mxu0 0.0
    %76 = vmatprep.subr.mxu0 0.0
    %77 = vmatpush1.msra.mxu0 0.0
    %78 = vmatprep.subr.mxu0 0.0
    %79 = vmatpush1.msra.mxu0 0.0
    %80 = vmatprep.subr.mxu0 0.0
    %81 = vmatpush1.msra.mxu0 0.0
    %82 = vmatprep.subr.mxu0 0.0
    %83 = vmatpush1.msra.mxu0 0.0
    %84 = vmatprep.subr.mxu0 0.0
    %85 = vmatpush1.msra.mxu0 0.0
    %86 = vmatprep.subr.mxu0 0.0
    %87 = vmatpush1.msra.mxu0 0.0
    %88 = vmatprep.subr.mxu0 0.0
    %89 = vmatpush1.msra.mxu0 0.0
    %90 = vmatprep.subr.mxu0 0.0
    %91 = vmatpush1.msra.mxu0 0.0
    %92 = vmatprep.subr.mxu0 0.0
    %93 = vmatpush1.msra.mxu0 0.0
    %94 = vmatprep.subr.mxu0 0.0
    %95 = vmatpush1.msra.mxu0 0.0
    %96 = vmatprep.subr.mxu0 0.0
    %97 = vmatpush1.msra.mxu0 0.0
    %98 = vmatprep.subr.mxu0 0.0
    %99 = vmatpush1.msra.mxu0 0.0
    %100 = vmatprep.subr.mxu0 0.0
    %101 = vmatpush1.msra.mxu0 0.0
    %102 = vmatprep.subr.mxu0 0.0
    %103 = vmatpush1.msra.mxu0 0.0
    %104 = vmatprep.subr.mxu0 0.0
    %105 = vmatpush1.msra.mxu0 0.0
    %106 = vmatprep.subr.mxu0 0.0
    %107 = vmatpush1.msra.mxu0 0.0
    %108 = vmatprep.subr.mxu0 0.0
    %109 = vmatpush1.msra.mxu0 0.0
    %110 = vmatprep.subr.mxu0 0.0
    %111 = vmatpush1.msra.mxu0 0.0
    %112 = vmatprep.subr.mxu0 0.0
    %113 = vmatpush1.msra.mxu0 0.0
    %114 = vmatprep.subr.mxu0 0.0
    %115 = vmatpush1.msra.mxu0 0.0
    %116 = vmatprep.subr.mxu0 0.0
    %117 = vmatpush1.msra.mxu0 0.0
    %118 = vmatprep.subr.mxu0 0.0
    %119 = vmatpush1.msra.mxu0 0.0
    %120 = vmatprep.subr.mxu0 0.0
    %121 = vmatpush1.msra.mxu0 0.0
    %122 = vmatprep.subr.mxu0 0.0
    %123 = vmatpush1.msra.mxu0 0.0
    %124 = vmatprep.subr.mxu0 0.0
    %125 = vmatpush1.msra.mxu0 0.0
    %126 = vmatprep.mubr.f32.mxu0 0.0
    %127 = vmatmul.mubr.f32.gmra.mrb[0].mxu0 %v60
    %v128 = vpop.f32.mrb[0].mxu0
    %v129 = vadd.f32 %v51, %v128
    %v130 = vpop.f32.mrb[0].mxu0
    %v131 = vadd.f32 %v55, %v130
    %132 = vdwg.mxu0
    %v133 = vmax.f32 %v129, 0.0
    %v134 = vmax.f32 %v131, 0.0
    %v135 = vld [vmem:[#allocation2] sm:$0xff]
    %v136 = vld [vmem:[#allocation2 + $0x8] sm:$0xff]
    %v137 = vld [vmem:[#allocation2 + $0x10] sm:$0xff]
    %v138 = vld [vmem:[#allocation2 + $0x18] sm:$0xff]
    %v139 = vld [vmem:[#allocation2 + $0x20] sm:$0xff]
    %v140 = vld [vmem:[#allocation2 + $0x28] sm:$0xff]
    %v141 = vld [vmem:[#allocation2 + $0x30] sm:$0xff]
    %v142 = vld [vmem:[#allocation2 + $0x38] sm:$0xff]
    %v143 = vld [vmem:[#allocation2 + $0x40] sm:$0xff]
    %v144 = vld [vmem:[#allocation2 + $0x48] sm:$0xff]
    %v145 = vld [vmem:[#allocation2 + $0x50] sm:$0xff]
    %v146 = vld [vmem:[#allocation2 + $0x58] sm:$0xff]
    %v147 = vld [vmem:[#allocation2 + $0x60] sm:$0xff]
    %v148 = vld [vmem:[#allocation2 + $0x68] sm:$0xff]
    %v149 = vld [vmem:[#allocation2 + $0x70] sm:$0xff]
    %v150 = vld [vmem:[#allocation2 + $0x78] sm:$0xff]
    %v151 = vld [vmem:[#allocation2 + $0x80] sm:$0xff]
    %v152 = vld [vmem:[#allocation2 + $0x88] sm:$0xff]
    %v153 = vld [vmem:[#allocation2 + $0x90] sm:$0xff]
    %v154 = vld [vmem:[#allocation2 + $0x98] sm:$0xff]
    %v155 = vld [vmem:[#allocation2 + $0xa0] sm:$0xff]
    %v156 = vld [vmem:[#allocation2 + $0xa8] sm:$0xff]
    %v157 = vld [vmem:[#allocation2 + $0xb0] sm:$0xff]
    %v158 = vld [vmem:[#allocation2 + $0xb8] sm:$0xff]
    %v159 = vld [vmem:[#allocation2 + $0xc0] sm:$0xff]
    %v160 = vld [vmem:[#allocation2 + $0xc8] sm:$0xff]
    %v161 = vld [vmem:[#allocation2 + $0xd0] sm:$0xff]
    %v162 = vld [vmem:[#allocation2 + $0xd8] sm:$0xff]
    %v163 = vld [vmem:[#allocation2 + $0xe0] sm:$0xff]
    %v164 = vld [vmem:[#allocation2 + $0xe8] sm:$0xff]
    %v165 = vld [vmem:[#allocation2 + $0xf0] sm:$0xff]
    %v166 = vld [vmem:[#allocation2 + $0xf8] sm:$0xff]
    %v167 = vld [vmem:[%s4] sm:$0x1]
    %v169 = vlaneseq
    %v170 = vshrl.u32 %v169, 7
    %v171 = vsub.s32 0, %v170
    %v172 = vrot.slane %v167, %v171
    %174 = vmatprep.subr.mxu0 0.0
    %175 = vmatpush1.msra.mxu0 %v135
    %176 = vmatprep.subr.mxu0 0.0
    %177 = vmatpush1.msra.mxu0 %v136
    %178 = vmatprep.subr.mxu0 0.0
    %179 = vmatpush1.msra.mxu0 %v137
    %180 = vmatprep.subr.mxu0 0.0
    %181 = vmatpush1.msra.mxu0 %v138
    %182 = vmatprep.subr.mxu0 0.0
    %183 = vmatpush1.msra.mxu0 %v139
    %184 = vmatprep.subr.mxu0 0.0
    %185 = vmatpush1.msra.mxu0 %v140
    %186 = vmatprep.subr.mxu0 0.0
    %187 = vmatpush1.msra.mxu0 %v141
    %188 = vmatprep.subr.mxu0 0.0
    %189 = vmatpush1.msra.mxu0 %v142
    %190 = vmatprep.subr.mxu0 0.0
    %191 = vmatpush1.msra.mxu0 %v143
    %192 = vmatprep.subr.mxu0 0.0
    %193 = vmatpush1.msra.mxu0 %v144
    %194 = vmatprep.subr.mxu0 0.0
    %195 = vmatpush1.msra.mxu0 %v145
    %196 = vmatprep.subr.mxu0 0.0
    %197 = vmatpush1.msra.mxu0 %v146
    %198 = vmatprep.subr.mxu0 0.0
    %199 = vmatpush1.msra.mxu0 %v147
    %200 = vmatprep.subr.mxu0 0.0
    %201 = vmatpush1.msra.mxu0 %v148
    %202 = vmatprep.subr.mxu0 0.0
    %203 = vmatpush1.msra.mxu0 %v149
    %204 = vmatprep.subr.mxu0 0.0
    %205 = vmatpush1.msra.mxu0 %v150
    %206 = vmatprep.subr.mxu0 0.0
    %207 = vmatpush1.msra.mxu0 %v151
    %208 = vmatprep.subr.mxu0 0.0
    %209 = vmatpush1.msra.mxu0 %v152
    %210 = vmatprep.subr.mxu0 0.0
    %211 = vmatpush1.msra.mxu0 %v153
    %212 = vmatprep.subr.mxu0 0.0
    %213 = vmatpush1.msra.mxu0 %v154
    %214 = vmatprep.subr.mxu0 0.0
    %215 = vmatpush1.msra.mxu0 %v155
    %216 = vmatprep.subr.mxu0 0.0
    %217 = vmatpush1.msra.mxu0 %v156
    %218 = vmatprep.subr.mxu0 0.0
    %219 = vmatpush1.msra.mxu0 %v157
    %220 = vmatprep.subr.mxu0 0.0
    %221 = vmatpush1.msra.mxu0 %v158
    %222 = vmatprep.subr.mxu0 0.0
    %223 = vmatpush1.msra.mxu0 %v159
    %224 = vmatprep.subr.mxu0 0.0
    %225 = vmatpush1.msra.mxu0 %v160
    %226 = vmatprep.subr.mxu0 0.0
    %227 = vmatpush1.msra.mxu0 %v161
    %228 = vmatprep.subr.mxu0 0.0
    %229 = vmatpush1.msra.mxu0 %v162
    %230 = vmatprep.subr.mxu0 0.0
    %231 = vmatpush1.msra.mxu0 %v163
    %232 = vmatprep.subr.mxu0 0.0
    %233 = vmatpush1.msra.mxu0 %v164
    %234 = vmatprep.subr.mxu0 0.0
    %235 = vmatpush1.msra.mxu0 %v165
    %236 = vmatprep.subr.mxu0 0.0
    %237 = vmatpush1.msra.mxu0 %v166
    %238 = vmatprep.mubr.f32.mxu0 %v134
    %239 = vmatmul.mubr.f32.gmra.mrb[0].mxu0 %v133
    %v240 = vpop.f32.mrb[0].mxu0
    %v241 = vadd.f32 %v172, %v240
    %v242 = vpop.f32.mrb[0].mxu0
    %243 = vdwg.mxu0
    %v244 = vmax.f32 %v241, 0.0
    %v245 = vld [vmem:[%s5] sm:$0xff]
    %v246 = vld [vmem:[%s5 + $0x8] sm:$0xff]
    %v247 = vld [vmem:[%s5 + $0x10] sm:$0xff]
    %v248 = vld [vmem:[%s5 + $0x18] sm:$0xff]
    %v249 = vld [vmem:[%s5 + $0x20] sm:$0xff]
    %v250 = vld [vmem:[%s5 + $0x28] sm:$0xff]
    %v251 = vld [vmem:[%s5 + $0x30] sm:$0xff]
    %v252 = vld [vmem:[%s5 + $0x38] sm:$0xff]
    %v253 = vld [vmem:[%s5 + $0x40] sm:$0xff]
    %v254 = vld [vmem:[%s5 + $0x48] sm:$0xff]
    %v255 = vld [vmem:[%s5 + $0x50] sm:$0xff]
    %v256 = vld [vmem:[%s5 + $0x58] sm:$0xff]
    %v257 = vld [vmem:[%s5 + $0x60] sm:$0xff]
    %v258 = vld [vmem:[%s5 + $0x68] sm:$0xff]
    %v259 = vld [vmem:[%s5 + $0x70] sm:$0xff]
    %v260 = vld [vmem:[%s5 + $0x78] sm:$0xff]
    %v261 = vld [vmem:[%s6] sm:$0x1]
    %v263 = vlaneseq
    %v264 = vshrl.u32 %v263, 7
    %v265 = vsub.s32 0, %v264
    %v266 = vrot.slane %v261, %v265
    %268 = vmatprep.subr.mxu0 0.0
    %269 = vmatpush1.msra.mxu0 %v245
    %270 = vmatprep.subr.mxu0 0.0
    %271 = vmatpush1.msra.mxu0 %v246
    %272 = vmatprep.subr.mxu0 0.0
    %273 = vmatpush1.msra.mxu0 %v247
    %274 = vmatprep.subr.mxu0 0.0
    %275 = vmatpush1.msra.mxu0 %v248
    %276 = vmatprep.subr.mxu0 0.0
    %277 = vmatpush1.msra.mxu0 %v249
    %278 = vmatprep.subr.mxu0 0.0
    %279 = vmatpush1.msra.mxu0 %v250
    %280 = vmatprep.subr.mxu0 0.0
    %281 = vmatpush1.msra.mxu0 %v251
    %282 = vmatprep.subr.mxu0 0.0
    %283 = vmatpush1.msra.mxu0 %v252
    %284 = vmatprep.subr.mxu0 0.0
    %285 = vmatpush1.msra.mxu0 %v253
    %286 = vmatprep.subr.mxu0 0.0
    %287 = vmatpush1.msra.mxu0 %v254
    %288 = vmatprep.subr.mxu0 0.0
    %289 = vmatpush1.msra.mxu0 %v255
    %290 = vmatprep.subr.mxu0 0.0
    %291 = vmatpush1.msra.mxu0 %v256
    %292 = vmatprep.subr.mxu0 0.0
    %293 = vmatpush1.msra.mxu0 %v257
    %294 = vmatprep.subr.mxu0 0.0
    %295 = vmatpush1.msra.mxu0 %v258
    %296 = vmatprep.subr.mxu0 0.0
    %297 = vmatpush1.msra.mxu0 %v259
    %298 = vmatprep.subr.mxu0 0.0
    %299 = vmatpush1.msra.mxu0 %v260
    %300 = vmatprep.subr.mxu0 0.0
    %301 = vmatpush1.msra.mxu0 0.0
    %302 = vmatprep.subr.mxu0 0.0
    %303 = vmatpush1.msra.mxu0 0.0
    %304 = vmatprep.subr.mxu0 0.0
    %305 = vmatpush1.msra.mxu0 0.0
    %306 = vmatprep.subr.mxu0 0.0
    %307 = vmatpush1.msra.mxu0 0.0
    %308 = vmatprep.subr.mxu0 0.0
    %309 = vmatpush1.msra.mxu0 0.0
    %310 = vmatprep.subr.mxu0 0.0
    %311 = vmatpush1.msra.mxu0 0.0
    %312 = vmatprep.subr.mxu0 0.0
    %313 = vmatpush1.msra.mxu0 0.0
    %314 = vmatprep.subr.mxu0 0.0
    %315 = vmatpush1.msra.mxu0 0.0
    %316 = vmatprep.subr.mxu0 0.0
    %317 = vmatpush1.msra.mxu0 0.0
    %318 = vmatprep.subr.mxu0 0.0
    %319 = vmatpush1.msra.mxu0 0.0
    %320 = vmatprep.subr.mxu0 0.0
    %321 = vmatpush1.msra.mxu0 0.0
    %322 = vmatprep.subr.mxu0 0.0
    %323 = vmatpush1.msra.mxu0 0.0
    %324 = vmatprep.subr.mxu0 0.0
    %325 = vmatpush1.msra.mxu0 0.0
    %326 = vmatprep.subr.mxu0 0.0
    %327 = vmatpush1.msra.mxu0 0.0
    %328 = vmatprep.subr.mxu0 0.0
    %329 = vmatpush1.msra.mxu0 0.0
    %330 = vmatprep.subr.mxu0 0.0
    %331 = vmatpush1.msra.mxu0 0.0
    %332 = vmatprep.mubr.f32.mxu0 0.0
    %333 = vmatmul.mubr.f32.gmra.mrb[0].mxu0 %v244
    %v334 = vpop.f32.mrb[0].mxu0
    %v335 = vadd.f32 %v266, %v334
    %v336 = vpop.f32.mrb[0].mxu0
    %337 = vdwg.mxu0
    %vm338 = vcmask 33792
    %339 = vst.msk [vmem:[#allocation5] sm:$0x3] %vm338, %v335
    // Predicated region
    $region34: #{tpu_custom_call.1} parent=1 // pred_check
      _
    $region35: #{tpu_custom_call.1} parent=1 // pred_check_branch
      %341 = sbr.rel (0) target = $region37
    $region36: #{tpu_custom_call.1} parent=1 // pred_region
      %s343 = ssub.s32 32, 32
      %344 = vsyncadd [#allocation4], %s343
      %s346 = sshll.u32 [#allocation5], 4
      %s347 = int_to_ptr.vmem [resolvable:$true] %s346
      %349 = dma.vmem_to_hbm [thread:$0]  %s347, 32, %s7, [#allocation4]
    $region37: #{tpu_custom_call.1} parent=1 // pred_fallthru
      _
    // Predicated region
    $region38: #{tpu_custom_call.1} parent=1 // pred_check
      _
    $region39: #{tpu_custom_call.1} parent=1 // pred_check_branch
      %351 = sbr.rel (0) target = $region41
    $region40: #{tpu_custom_call.1} parent=1 // pred_region
      %352 = dma.done [#allocation4], 32
    $region41: #{tpu_custom_call.1} parent=1 // pred_fallthru
      _
    %353 = vsyncpa [#allocation3], 1
    %354 = vsyncpa [#allocation4], 1

</llo_original>
